<compile_context>
chip_gen: v5e
topology: v5e:2x2
jax: 0.10.0
libtpu: 0.0.40
codegen_flags: <defaults>
</compile_context>

<pallas_src>
import functools

import jax
import jax.numpy as jnp
from jax.experimental import pallas as pl
from jax.experimental.pallas import tpu as pltpu

LANE = 128
PACK = 8      # 8 rows of the 16-wide feature packed into one 128-lane row
FEAT = 16


def _mlp_kernel(x_ref, w123_ref, b123_ref, w4_ref, b4_ref, o_ref):
    # Hot path: 4 lane-dense MXU matmuls + bias/ReLU on the VPU, all in VMEM.
    h = x_ref[...]                                   # (TMG, 128)
    for l in range(3):                               # static unroll, fixed 3 hidden layers
        h = jnp.dot(h, w123_ref[l], preferred_element_type=jnp.float32) + b123_ref[l]
        h = jnp.maximum(h, 0.0)
    o = jnp.dot(h, w4_ref[...], preferred_element_type=jnp.float32) + b4_ref[...]
    o_ref[...] = o.astype(o_ref.dtype)               # (TMG, 8*od_pad), lane-dense


def _pick_tile(mg):
    """Packed-row tile size: big enough to amortize per-step overhead, >=2 tiles
    when possible so the 'parallel' grid axis can use both v7x TensorCores."""
    if mg >= 1024:
        return 512
    if mg >= 16:
        return ((mg + 1) // 2 + 7) // 8 * 8          # ~2 tiles, sublane-aligned
    return mg                                        # tiny inputs: single full block


@functools.partial(jax.jit, static_argnames=("output_dim",))
def mlp_forward(x, packed, output_dim):
    """x: (B, 16, 16) f32; packed: dict from pack_params(). Returns (B, 16, output_dim)."""
    B, H, W = x.shape
    assert H == FEAT and W == FEAT
    M = B * H                                        # rows the Linear acts on
    MG = M // PACK                                   # packed rows (M is a multiple of 16)
    n4 = packed["w4"].shape[1]                       # 8 * od_pad, multiple of 128
    od_pad = n4 // PACK

    x2 = x.reshape(MG, PACK * FEAT)                  # (MG, 128), lane-dense, free reshape

    TMG = _pick_tile(MG)
    n_tiles = pl.cdiv(MG, TMG)
    MG_pad = n_tiles * TMG
    if MG_pad != MG:
        x2 = jnp.pad(x2, ((0, MG_pad - MG), (0, 0)))

    flops = 2 * MG_pad * LANE * (3 * LANE + n4)
    bytes_accessed = 4 * (MG_pad * LANE + MG_pad * n4
                          + 3 * LANE * LANE + 3 * LANE + LANE * n4 + n4)

    out2 = pl.pallas_call(
        _mlp_kernel,
        out_shape=jax.ShapeDtypeStruct((MG_pad, n4), jnp.float32),
        grid=(n_tiles,),
        in_specs=[
            pl.BlockSpec((TMG, PACK * FEAT), lambda i: (i, 0)),          # x tile streams
            pl.BlockSpec(packed["w123"].shape, lambda i: (0, 0, 0)),     # resident weights
            pl.BlockSpec(packed["b123"].shape, lambda i: (0, 0, 0)),
            pl.BlockSpec(packed["w4"].shape, lambda i: (0, 0)),
            pl.BlockSpec(packed["b4"].shape, lambda i: (0, 0)),
        ],
        out_specs=pl.BlockSpec((TMG, n4), lambda i: (i, 0)),
        compiler_params=pltpu.CompilerParams(
            dimension_semantics=("parallel",)),       # shard M across v7x's 2 TCs
        cost_estimate=pl.CostEstimate(
            flops=flops, transcendentals=0, bytes_accessed=bytes_accessed),
    )(x2, packed["w123"], packed["b123"], packed["w4"], packed["b4"])

    out = out2[:MG].reshape(M, od_pad)[:, :output_dim]
    return out.reshape(B, H, output_dim)


def init_params(key, output_dim):
    """nn.Linear-style init; W stored as (in,out) so the kernel computes x @ w."""
    dims = [(16, 16), (16, 16), (16, 16), (16, output_dim)]
    params = {}
    for i, (fan_in, fan_out) in enumerate(dims, start=1):
        key, kw, kb = jax.random.split(key, 3)
        bound = 1.0 / jnp.sqrt(fan_in)
        w_torch = jax.random.uniform(kw, (fan_out, fan_in), jnp.float32, -bound, bound)
        b = jax.random.uniform(kb, (fan_out,), jnp.float32, -bound, bound)
        params[f"w{i}"] = w_torch.T                   # (in, out)
        params[f"b{i}"] = b.reshape(1, fan_out)
    return params


def _block_diag8(w):
    """(16, n) -> (128, 8*n) block diagonal (8 copies)."""
    return jax.scipy.linalg.block_diag(*([w] * PACK))


def pack_params(params, output_dim):
    """Build lane-dense, block-diagonal weights for the packed (…,128) layout."""
    od_pad = ((output_dim + FEAT - 1) // FEAT) * FEAT   # keep 8*od_pad a multiple of 128
    w123 = jnp.stack([_block_diag8(params[f"w{i}"]) for i in (1, 2, 3)])         # (3,128,128)
    b123 = jnp.stack([jnp.tile(params[f"b{i}"], (1, PACK)) for i in (1, 2, 3)])  # (3,1,128)
    w4p = jnp.pad(params["w4"], ((0, 0), (0, od_pad - output_dim)))
    b4p = jnp.pad(params["b4"], ((0, 0), (0, od_pad - output_dim)))
    return {
        "w123": w123.astype(jnp.float32),
        "b123": b123.astype(jnp.float32),
        "w4": _block_diag8(w4p).astype(jnp.float32),         # (128, 8*od_pad)
        "b4": jnp.tile(b4p, (1, PACK)).astype(jnp.float32),  # (1, 8*od_pad)
    }


class MemoryNetPallas:
    def __init__(self, input_dim, output_dim, key):
        h, w = input_dim
        if h != 16:
            raise ValueError(f"Expecting input height: 16, got: {h}")
        if w != 16:
            raise ValueError(f"Expecting input width: 16, got: {w}")
        self.output_dim = output_dim
        self.online_params = init_params(key, output_dim)
        # target is a deep copy of online (frozen; no grads in this synthetic setup)
        self.target_params = jax.tree_util.tree_map(lambda a: a.copy(), self.online_params)
        self._online_packed = pack_params(self.online_params, output_dim)
        self._target_packed = pack_params(self.target_params, output_dim)

    def forward(self, x, model):
        if model == "online":
            return mlp_forward(x, self._online_packed, self.output_dim)
        elif model == "target":
            return mlp_forward(x, self._target_packed, self.output_dim)
        else:
            raise ValueError(model)


def _ref(x, p):
    h = x.reshape(-1, 16)
    h = jnp.maximum(h @ p["w1"] + p["b1"], 0.0)
    h = jnp.maximum(h @ p["w2"] + p["b2"], 0.0)
    h = jnp.maximum(h @ p["w3"] + p["b3"], 0.0)
    h = h @ p["w4"] + p["b4"]
    return h.reshape(x.shape[0], 16, -1)


if __name__ == "__main__":
    key = jax.random.PRNGKey(0)
    key, kx, kx2 = jax.random.split(key, 3)

    B, output_dim = 2, 8
    x = jax.random.normal(kx, (B, 16, 16), jnp.float32)

    net = MemoryNetPallas((16, 16), output_dim, key)

    out_online = net.forward(x, "online")
    out_target = net.forward(x, "target")
    jax.block_until_ready(out_online)
    jax.block_until_ready(out_target)

    ref_out = _ref(x, net.online_params)
    assert out_online.shape == (B, 16, output_dim)
    assert jnp.allclose(out_online, ref_out, atol=1e-5, rtol=1e-5)
    assert jnp.allclose(out_online, out_target, atol=1e-6)

    # Larger batch to exercise the multi-tile (grid > 1) + row-padding path.
    B2 = 260  # M=4160 -> 520 packed rows -> 2 tiles of 264 with 8 padded rows
    x_big = jax.random.normal(kx2, (B2, 16, 16), jnp.float32)
    out_big = net.forward(x_big, "online")
    jax.block_until_ready(out_big)
    assert out_big.shape == (B2, 16, output_dim)
    assert jnp.allclose(out_big, _ref(x_big, net.online_params), atol=1e-5, rtol=1e-5)

    print("KERNEL_OK")
</pallas_src>

<mosaic_0001>
module attributes {stable_mosaic.version = 11 : i64} {
  func.func @_mlp_kernel(%arg0: i32, %arg1: memref<4x128xf32, #tpu.memory_space<vmem>>, %arg2: memref<3x128x128xf32, #tpu.memory_space<vmem>>, %arg3: memref<3x1x128xf32, #tpu.memory_space<vmem>>, %arg4: memref<128x128xf32, #tpu.memory_space<vmem>>, %arg5: memref<1x128xf32, #tpu.memory_space<vmem>>, %arg6: memref<4x128xf32, #tpu.memory_space<vmem>>) attributes {dimension_semantics = [#tpu.dimension_semantics<parallel>], iteration_bounds = array<i64: 1>, scalar_prefetch = 0 : i64, scratch_operands = 0 : i64, tpu.core_type = #tpu.core_type<tc>, window_params = [{transform_indices = @transform_0, window_bounds = array<i64: 4, 128>}, {pipeline_mode = #tpu.pipeline_mode<synchronous>, transform_indices = @transform_1, window_bounds = array<i64: 3, 128, 128>}, {pipeline_mode = #tpu.pipeline_mode<synchronous>, transform_indices = @transform_2, window_bounds = array<i64: 3, 1, 128>}, {pipeline_mode = #tpu.pipeline_mode<synchronous>, transform_indices = @transform_3, window_bounds = array<i64: 128, 128>}, {pipeline_mode = #tpu.pipeline_mode<synchronous>, transform_indices = @transform_4, window_bounds = array<i64: 1, 128>}, {transform_indices = @transform_5, window_bounds = array<i64: 4, 128>}]} {
    %c0 = arith.constant 0 : index
    %c0_0 = arith.constant 0 : index
    %0 = vector.load %arg1[%c0, %c0_0] : memref<4x128xf32, #tpu.memory_space<vmem>>, vector<4x128xf32>
    %c0_1 = arith.constant 0 : index
    %c0_2 = arith.constant 0 : index
    %c0_3 = arith.constant 0 : index
    %1 = vector.load %arg2[%c0_1, %c0_2, %c0_3] : memref<3x128x128xf32, #tpu.memory_space<vmem>>, vector<1x128x128xf32>
    %2 = vector.shape_cast %1 : vector<1x128x128xf32> to vector<128x128xf32>
    %cst = arith.constant dense<0.000000e+00> : vector<4x128xf32>
    %3 = tpu.matmul %0, %2, %cst {dimension_numbers = #tpu.dot_dimension_numbers<[1], [0], [0], [1], [0, 0, 1, 1], [], []>} : vector<4x128xf32>, vector<128x128xf32>, vector<4x128xf32> -> vector<4x128xf32>
    %c0_4 = arith.constant 0 : index
    %c0_5 = arith.constant 0 : index
    %c0_6 = arith.constant 0 : index
    %4 = vector.load %arg3[%c0_4, %c0_5, %c0_6] : memref<3x1x128xf32, #tpu.memory_space<vmem>>, vector<1x1x128xf32>
    %5 = vector.shape_cast %4 : vector<1x1x128xf32> to vector<1x128xf32>
    %6 = vector.broadcast %5 : vector<1x128xf32> to vector<4x128xf32>
    %7 = arith.addf %3, %6 : vector<4x128xf32>
    %cst_7 = arith.constant 0.000000e+00 : f32
    %8 = vector.broadcast %cst_7 : f32 to vector<4x128xf32>
    %9 = arith.maximumf %7, %8 : vector<4x128xf32>
    %c1 = arith.constant 1 : index
    %c0_8 = arith.constant 0 : index
    %c0_9 = arith.constant 0 : index
    %10 = vector.load %arg2[%c1, %c0_8, %c0_9] : memref<3x128x128xf32, #tpu.memory_space<vmem>>, vector<1x128x128xf32>
    %11 = vector.shape_cast %10 : vector<1x128x128xf32> to vector<128x128xf32>
    %cst_10 = arith.constant dense<0.000000e+00> : vector<4x128xf32>
    %12 = tpu.matmul %9, %11, %cst_10 {dimension_numbers = #tpu.dot_dimension_numbers<[1], [0], [0], [1], [0, 0, 1, 1], [], []>} : vector<4x128xf32>, vector<128x128xf32>, vector<4x128xf32> -> vector<4x128xf32>
    %c1_11 = arith.constant 1 : index
    %c0_12 = arith.constant 0 : index
    %c0_13 = arith.constant 0 : index
    %13 = vector.load %arg3[%c1_11, %c0_12, %c0_13] : memref<3x1x128xf32, #tpu.memory_space<vmem>>, vector<1x1x128xf32>
    %14 = vector.shape_cast %13 : vector<1x1x128xf32> to vector<1x128xf32>
    %15 = vector.broadcast %14 : vector<1x128xf32> to vector<4x128xf32>
    %16 = arith.addf %12, %15 : vector<4x128xf32>
    %cst_14 = arith.constant 0.000000e+00 : f32
    %17 = vector.broadcast %cst_14 : f32 to vector<4x128xf32>
    %18 = arith.maximumf %16, %17 : vector<4x128xf32>
    %c2 = arith.constant 2 : index
    %c0_15 = arith.constant 0 : index
    %c0_16 = arith.constant 0 : index
    %19 = vector.load %arg2[%c2, %c0_15, %c0_16] : memref<3x128x128xf32, #tpu.memory_space<vmem>>, vector<1x128x128xf32>
    %20 = vector.shape_cast %19 : vector<1x128x128xf32> to vector<128x128xf32>
    %cst_17 = arith.constant dense<0.000000e+00> : vector<4x128xf32>
    %21 = tpu.matmul %18, %20, %cst_17 {dimension_numbers = #tpu.dot_dimension_numbers<[1], [0], [0], [1], [0, 0, 1, 1], [], []>} : vector<4x128xf32>, vector<128x128xf32>, vector<4x128xf32> -> vector<4x128xf32>
    %c2_18 = arith.constant 2 : index
    %c0_19 = arith.constant 0 : index
    %c0_20 = arith.constant 0 : index
    %22 = vector.load %arg3[%c2_18, %c0_19, %c0_20] : memref<3x1x128xf32, #tpu.memory_space<vmem>>, vector<1x1x128xf32>
    %23 = vector.shape_cast %22 : vector<1x1x128xf32> to vector<1x128xf32>
    %24 = vector.broadcast %23 : vector<1x128xf32> to vector<4x128xf32>
    %25 = arith.addf %21, %24 : vector<4x128xf32>
    %cst_21 = arith.constant 0.000000e+00 : f32
    %26 = vector.broadcast %cst_21 : f32 to vector<4x128xf32>
    %27 = arith.maximumf %25, %26 : vector<4x128xf32>
    %c0_22 = arith.constant 0 : index
    %c0_23 = arith.constant 0 : index
    %28 = vector.load %arg4[%c0_22, %c0_23] : memref<128x128xf32, #tpu.memory_space<vmem>>, vector<128x128xf32>
    %cst_24 = arith.constant dense<0.000000e+00> : vector<4x128xf32>
    %29 = tpu.matmul %27, %28, %cst_24 {dimension_numbers = #tpu.dot_dimension_numbers<[1], [0], [0], [1], [0, 0, 1, 1], [], []>} : vector<4x128xf32>, vector<128x128xf32>, vector<4x128xf32> -> vector<4x128xf32>
    %c0_25 = arith.constant 0 : index
    %c0_26 = arith.constant 0 : index
    %30 = vector.load %arg5[%c0_25, %c0_26] : memref<1x128xf32, #tpu.memory_space<vmem>>, vector<1x128xf32>
    %31 = vector.broadcast %30 : vector<1x128xf32> to vector<4x128xf32>
    %32 = arith.addf %29, %31 : vector<4x128xf32>
    %c0_27 = arith.constant 0 : index
    %c0_28 = arith.constant 0 : index
    %33 = vector.load %arg6[%c0_27, %c0_28] : memref<4x128xf32, #tpu.memory_space<vmem>>, vector<4x128xf32>
    tpu.vector_store %arg6[%c0_27, %c0_28], %32 {strides = array<i32>} : memref<4x128xf32, #tpu.memory_space<vmem>>, vector<4x128xf32>,
    return
  }
  func.func @transform_0(%arg0: i32) -> (i32, i32) {
    %c0_i32 = arith.constant 0 : i32
    %c0_i32_0 = arith.constant 0 : i32
    return %arg0, %c0_i32 : i32, i32
  }
  func.func @transform_1(%arg0: i32) -> (i32, i32, i32) {
    %c0_i32 = arith.constant 0 : i32
    %c0_i32_0 = arith.constant 0 : i32
    %c0_i32_1 = arith.constant 0 : i32
    %c0_i32_2 = arith.constant 0 : i32
    return %c0_i32, %c0_i32_0, %c0_i32_1 : i32, i32, i32
  }
  func.func @transform_2(%arg0: i32) -> (i32, i32, i32) {
    %c0_i32 = arith.constant 0 : i32
    %c0_i32_0 = arith.constant 0 : i32
    %c0_i32_1 = arith.constant 0 : i32
    %c0_i32_2 = arith.constant 0 : i32
    return %c0_i32, %c0_i32_0, %c0_i32_1 : i32, i32, i32
  }
  func.func @transform_3(%arg0: i32) -> (i32, i32) {
    %c0_i32 = arith.constant 0 : i32
    %c0_i32_0 = arith.constant 0 : i32
    %c0_i32_1 = arith.constant 0 : i32
    return %c0_i32, %c0_i32_0 : i32, i32
  }
  func.func @transform_4(%arg0: i32) -> (i32, i32) {
    %c0_i32 = arith.constant 0 : i32
    %c0_i32_0 = arith.constant 0 : i32
    %c0_i32_1 = arith.constant 0 : i32
    return %c0_i32, %c0_i32_0 : i32, i32
  }
  func.func @transform_5(%arg0: i32) -> (i32, i32) {
    %c0_i32 = arith.constant 0 : i32
    %c0_i32_0 = arith.constant 0 : i32
    return %arg0, %c0_i32 : i32, i32
  }
}

</mosaic_0001>

<llo_original>
// kernel: mlp_forward.1
$region0: #{mlp_forward.1}
  #allocation0 [shape = 'u32[]', space=smem, size = 0x4, offset = 0x4, fixed_abs, tag = 'smem constant byte address 0x4 - core index']
  #allocation1 [shape = 'u32[72,128]{1,0:T(1,128)}', space=vmem, size = 0x9000, scoped, tag = 'internal scratch']
  %s0 = inlined_call_operand.vmem [shape: f32[4,128], index: 0, kind: input, shape index: {}]
  %s1 = inlined_call_operand.hbm [shape: f32[3,128,128], index: 1, kind: input, shape index: {}]
  %s2 = inlined_call_operand.vmem [shape: f32[3,1,128], index: 2, kind: input, shape index: {}]
  %s3 = inlined_call_operand.hbm [shape: f32[128,128], index: 3, kind: input, shape index: {}]
  %s4 = inlined_call_operand.vmem [shape: f32[1,128], index: 4, kind: input, shape index: {}]
  %s5 = inlined_call_operand.vmem [shape: f32[4,128], index: 5, kind: output, shape index: {}]
  %s6 = sld [smem:[#allocation0]]
  $region38: #{mlp_forward.1} parent=0
    _
  %s8 = ssub.s32 1, %s6
  %s9 = scalar_select 0, %s8, %s6
  $region1: #{mlp_forward.1} parent=0
    #allocation2 [shape = 'u8[196608]{0}', space=vmem, size = 0x30000, scoped, tag = 'input window, operand 1, single buffered']
    #allocation3 [shape = 's32[1]{0}', space=sflag, size = 0x4, scoped, tag = 'scoped memory for mlp_forward.1']
    #allocation4 [shape = 'u8[65536]{0}', space=vmem, size = 0x10000, scoped, tag = 'input window, operand 3, single buffered']
    #allocation5 [shape = 's32[1]{0}', space=sflag, size = 0x4, scoped, tag = 'scoped memory for mlp_forward.1']
    %10 = vsyncpa [#allocation3], 0
    %11 = vsyncpa [#allocation5], 0
    // Predicated region
    $region2: #{mlp_forward.1} parent=1 // pred_check
      _
    $region3: #{mlp_forward.1} parent=1 // pred_check_branch
      %13 = sbr.rel (0) target = $region5
    $region4: #{mlp_forward.1} parent=1 // pred_region
      _
    $region5: #{mlp_forward.1} parent=1 // pred_fallthru
      _
    // Predicated region
    $region6: #{mlp_forward.1} parent=1 // pred_check
      _
    $region7: #{mlp_forward.1} parent=1 // pred_check_branch
      %15 = sbr.rel (0) target = $region9
    $region8: #{mlp_forward.1} parent=1 // pred_region
      %17 = vsyncadd [#allocation3], 0
      %s18 = sshll.u32 %s1, 4
      %s19 = int_to_ptr.hbm [resolvable:$true] %s18
      %s20 = sshll.u32 [#allocation2], 4
      %s21 = int_to_ptr.vmem [resolvable:$true] %s20
      %26 = dma.hbm_to_vmem [thread:$0]  %s19, 6144, %s21, [#allocation3], 128, 128, 8
    $region9: #{mlp_forward.1} parent=1 // pred_fallthru
      _
    // Predicated region
    $region10: #{mlp_forward.1} parent=1 // pred_check
      _
    $region11: #{mlp_forward.1} parent=1 // pred_check_branch
      %28 = sbr.rel (0) target = $region13
    $region12: #{mlp_forward.1} parent=1 // pred_region
      _
    $region13: #{mlp_forward.1} parent=1 // pred_fallthru
      _
    // Predicated region
    $region14: #{mlp_forward.1} parent=1 // pred_check
      _
    $region15: #{mlp_forward.1} parent=1 // pred_check_branch
      %30 = sbr.rel (0) target = $region17
    $region16: #{mlp_forward.1} parent=1 // pred_region
      %32 = vsyncadd [#allocation5], 0
      %s33 = sshll.u32 %s3, 4
      %s34 = int_to_ptr.hbm [resolvable:$true] %s33
      %s35 = sshll.u32 [#allocation4], 4
      %s36 = int_to_ptr.vmem [resolvable:$true] %s35
      %41 = dma.hbm_to_vmem [thread:$0]  %s34, 2048, %s36, [#allocation5], 128, 128, 8
    $region17: #{mlp_forward.1} parent=1 // pred_fallthru
      _
    // Predicated region
    $region18: #{mlp_forward.1} parent=1 // pred_check
      _
    $region19: #{mlp_forward.1} parent=1 // pred_check_branch
      %43 = sbr.rel (0) target = $region21
    $region20: #{mlp_forward.1} parent=1 // pred_region
      _
    $region21: #{mlp_forward.1} parent=1 // pred_fallthru
      _
    // Predicated region
    $region22: #{mlp_forward.1} parent=1 // pred_check
      _
    $region23: #{mlp_forward.1} parent=1 // pred_check_branch
      %45 = sbr.rel (0) target = $region25
    $region24: #{mlp_forward.1} parent=1 // pred_region
      %47 = dma.done [#allocation3], 6144
    $region25: #{mlp_forward.1} parent=1 // pred_fallthru
      _
    // Predicated region
    $region26: #{mlp_forward.1} parent=1 // pred_check
      _
    $region27: #{mlp_forward.1} parent=1 // pred_check_branch
      %49 = sbr.rel (0) target = $region29
    $region28: #{mlp_forward.1} parent=1 // pred_region
      %51 = dma.done [#allocation5], 2048
    $region29: #{mlp_forward.1} parent=1 // pred_fallthru
      _
    %v52 = vld [vmem:[%s0] sm:$0xf]
    %v53 = vld [vmem:[#allocation2] sm:$0xff]
    %v54 = vld [vmem:[#allocation2 + $0x8] sm:$0xff]
    %v55 = vld [vmem:[#allocation2 + $0x10] sm:$0xff]
    %v56 = vld [vmem:[#allocation2 + $0x18] sm:$0xff]
    %v57 = vld [vmem:[#allocation2 + $0x20] sm:$0xff]
    %v58 = vld [vmem:[#allocation2 + $0x28] sm:$0xff]
    %v59 = vld [vmem:[#allocation2 + $0x30] sm:$0xff]
    %v60 = vld [vmem:[#allocation2 + $0x38] sm:$0xff]
    %v61 = vld [vmem:[#allocation2 + $0x40] sm:$0xff]
    %v62 = vld [vmem:[#allocation2 + $0x48] sm:$0xff]
    %v63 = vld [vmem:[#allocation2 + $0x50] sm:$0xff]
    %v64 = vld [vmem:[#allocation2 + $0x58] sm:$0xff]
    %v65 = vld [vmem:[#allocation2 + $0x60] sm:$0xff]
    %v66 = vld [vmem:[#allocation2 + $0x68] sm:$0xff]
    %v67 = vld [vmem:[#allocation2 + $0x70] sm:$0xff]
    %v68 = vld [vmem:[#allocation2 + $0x78] sm:$0xff]
    %v69 = vld [vmem:[%s2] sm:$0x1]
    %v71 = vperm.slane %v69, 0
    %73 = vmatpush.msra.mxu0 %v68
    %74 = vmatpush.msra.mxu0 %v67
    %75 = vmatpush.msra.mxu0 %v66
    %76 = vmatpush.msra.mxu0 %v65
    %77 = vmatpush.msra.mxu0 %v64
    %78 = vmatpush.msra.mxu0 %v63
    %79 = vmatpush.msra.mxu0 %v62
    %80 = vmatpush.msra.mxu0 %v61
    %81 = vmatpush.msra.mxu0 %v60
    %82 = vmatpush.msra.mxu0 %v59
    %83 = vmatpush.msra.mxu0 %v58
    %84 = vmatpush.msra.mxu0 %v57
    %85 = vmatpush.msra.mxu0 %v56
    %86 = vmatpush.msra.mxu0 %v55
    %87 = vmatpush.msra.mxu0 %v54
    %88 = vmatpush.msra.mxu0 %v53
    %89 = vmatmul.f32.gmra.mxu0 %v52
    %v90 = vpop.f32.mrf.mxu0
    %v91 = vadd.f32 %v71, %v90
    %92 = vdwg.mxu0
    %v93 = vmax.f32 %v91, 0.0
    %s94 = scalar_lea.vmem [#allocation2], 128
    %v95 = vld [vmem:[%s94] sm:$0xff]
    %v96 = vld [vmem:[%s94 + $0x8] sm:$0xff]
    %v97 = vld [vmem:[%s94 + $0x10] sm:$0xff]
    %v98 = vld [vmem:[%s94 + $0x18] sm:$0xff]
    %v99 = vld [vmem:[%s94 + $0x20] sm:$0xff]
    %v100 = vld [vmem:[%s94 + $0x28] sm:$0xff]
    %v101 = vld [vmem:[%s94 + $0x30] sm:$0xff]
    %v102 = vld [vmem:[%s94 + $0x38] sm:$0xff]
    %v103 = vld [vmem:[%s94 + $0x40] sm:$0xff]
    %v104 = vld [vmem:[%s94 + $0x48] sm:$0xff]
    %v105 = vld [vmem:[%s94 + $0x50] sm:$0xff]
    %v106 = vld [vmem:[%s94 + $0x58] sm:$0xff]
    %v107 = vld [vmem:[%s94 + $0x60] sm:$0xff]
    %v108 = vld [vmem:[%s94 + $0x68] sm:$0xff]
    %v109 = vld [vmem:[%s94 + $0x70] sm:$0xff]
    %v110 = vld [vmem:[%s94 + $0x78] sm:$0xff]
    %s111 = scalar_lea.vmem %s2, 1
    %v112 = vld [vmem:[%s111] sm:$0x1]
    %v114 = vperm.slane %v112, 0
    %116 = vmatpush.msra.mxu0 %v110
    %117 = vmatpush.msra.mxu0 %v109
    %118 = vmatpush.msra.mxu0 %v108
    %119 = vmatpush.msra.mxu0 %v107
    %120 = vmatpush.msra.mxu0 %v106
    %121 = vmatpush.msra.mxu0 %v105
    %122 = vmatpush.msra.mxu0 %v104
    %123 = vmatpush.msra.mxu0 %v103
    %124 = vmatpush.msra.mxu0 %v102
    %125 = vmatpush.msra.mxu0 %v101
    %126 = vmatpush.msra.mxu0 %v100
    %127 = vmatpush.msra.mxu0 %v99
    %128 = vmatpush.msra.mxu0 %v98
    %129 = vmatpush.msra.mxu0 %v97
    %130 = vmatpush.msra.mxu0 %v96
    %131 = vmatpush.msra.mxu0 %v95
    %132 = vmatmul.f32.gmra.mxu0 %v93
    %v133 = vpop.f32.mrf.mxu0
    %v134 = vadd.f32 %v114, %v133
    %135 = vdwg.mxu0
    %v136 = vmax.f32 %v134, 0.0
    %s137 = scalar_lea.vmem [#allocation2], 256
    %v138 = vld [vmem:[%s137] sm:$0xff]
    %v139 = vld [vmem:[%s137 + $0x8] sm:$0xff]
    %v140 = vld [vmem:[%s137 + $0x10] sm:$0xff]
    %v141 = vld [vmem:[%s137 + $0x18] sm:$0xff]
    %v142 = vld [vmem:[%s137 + $0x20] sm:$0xff]
    %v143 = vld [vmem:[%s137 + $0x28] sm:$0xff]
    %v144 = vld [vmem:[%s137 + $0x30] sm:$0xff]
    %v145 = vld [vmem:[%s137 + $0x38] sm:$0xff]
    %v146 = vld [vmem:[%s137 + $0x40] sm:$0xff]
    %v147 = vld [vmem:[%s137 + $0x48] sm:$0xff]
    %v148 = vld [vmem:[%s137 + $0x50] sm:$0xff]
    %v149 = vld [vmem:[%s137 + $0x58] sm:$0xff]
    %v150 = vld [vmem:[%s137 + $0x60] sm:$0xff]
    %v151 = vld [vmem:[%s137 + $0x68] sm:$0xff]
    %v152 = vld [vmem:[%s137 + $0x70] sm:$0xff]
    %v153 = vld [vmem:[%s137 + $0x78] sm:$0xff]
    %s154 = scalar_lea.vmem %s2, 2
    %v155 = vld [vmem:[%s154] sm:$0x1]
    %v157 = vperm.slane %v155, 0
    %159 = vmatpush.msra.mxu0 %v153
    %160 = vmatpush.msra.mxu0 %v152
    %161 = vmatpush.msra.mxu0 %v151
    %162 = vmatpush.msra.mxu0 %v150
    %163 = vmatpush.msra.mxu0 %v149
    %164 = vmatpush.msra.mxu0 %v148
    %165 = vmatpush.msra.mxu0 %v147
    %166 = vmatpush.msra.mxu0 %v146
    %167 = vmatpush.msra.mxu0 %v145
    %168 = vmatpush.msra.mxu0 %v144
    %169 = vmatpush.msra.mxu0 %v143
    %170 = vmatpush.msra.mxu0 %v142
    %171 = vmatpush.msra.mxu0 %v141
    %172 = vmatpush.msra.mxu0 %v140
    %173 = vmatpush.msra.mxu0 %v139
    %174 = vmatpush.msra.mxu0 %v138
    %175 = vmatmul.f32.gmra.mxu0 %v136
    %v176 = vpop.f32.mrf.mxu0
    %v177 = vadd.f32 %v157, %v176
    %178 = vdwg.mxu0
    %v179 = vmax.f32 %v177, 0.0
    %v180 = vld [vmem:[#allocation4] sm:$0xff]
    %v181 = vld [vmem:[#allocation4 + $0x8] sm:$0xff]
    %v182 = vld [vmem:[#allocation4 + $0x10] sm:$0xff]
    %v183 = vld [vmem:[#allocation4 + $0x18] sm:$0xff]
    %v184 = vld [vmem:[#allocation4 + $0x20] sm:$0xff]
    %v185 = vld [vmem:[#allocation4 + $0x28] sm:$0xff]
    %v186 = vld [vmem:[#allocation4 + $0x30] sm:$0xff]
    %v187 = vld [vmem:[#allocation4 + $0x38] sm:$0xff]
    %v188 = vld [vmem:[#allocation4 + $0x40] sm:$0xff]
    %v189 = vld [vmem:[#allocation4 + $0x48] sm:$0xff]
    %v190 = vld [vmem:[#allocation4 + $0x50] sm:$0xff]
    %v191 = vld [vmem:[#allocation4 + $0x58] sm:$0xff]
    %v192 = vld [vmem:[#allocation4 + $0x60] sm:$0xff]
    %v193 = vld [vmem:[#allocation4 + $0x68] sm:$0xff]
    %v194 = vld [vmem:[#allocation4 + $0x70] sm:$0xff]
    %v195 = vld [vmem:[#allocation4 + $0x78] sm:$0xff]
    %v196 = vld [vmem:[%s4] sm:$0x1]
    %v198 = vperm.slane %v196, 0
    %200 = vmatpush.msra.mxu0 %v195
    %201 = vmatpush.msra.mxu0 %v194
    %202 = vmatpush.msra.mxu0 %v193
    %203 = vmatpush.msra.mxu0 %v192
    %204 = vmatpush.msra.mxu0 %v191
    %205 = vmatpush.msra.mxu0 %v190
    %206 = vmatpush.msra.mxu0 %v189
    %207 = vmatpush.msra.mxu0 %v188
    %208 = vmatpush.msra.mxu0 %v187
    %209 = vmatpush.msra.mxu0 %v186
    %210 = vmatpush.msra.mxu0 %v185
    %211 = vmatpush.msra.mxu0 %v184
    %212 = vmatpush.msra.mxu0 %v183
    %213 = vmatpush.msra.mxu0 %v182
    %214 = vmatpush.msra.mxu0 %v181
    %215 = vmatpush.msra.mxu0 %v180
    %216 = vmatmul.f32.gmra.mxu0 %v179
    %v217 = vpop.f32.mrf.mxu0
    %v218 = vadd.f32 %v198, %v217
    %219 = vdwg.mxu0
    %220 = vst [vmem:[%s5] sm:$0xf] %v218
    // Predicated region
    $region30: #{mlp_forward.1} parent=1 // pred_check
      _
    $region31: #{mlp_forward.1} parent=1 // pred_check_branch
      %222 = sbr.rel (0) target = $region33
    $region32: #{mlp_forward.1} parent=1 // pred_region
      _
    $region33: #{mlp_forward.1} parent=1 // pred_fallthru
      _
    // Predicated region
    $region34: #{mlp_forward.1} parent=1 // pred_check
      _
    $region35: #{mlp_forward.1} parent=1 // pred_check_branch
      %224 = sbr.rel (0) target = $region37
    $region36: #{mlp_forward.1} parent=1 // pred_region
      _
    $region37: #{mlp_forward.1} parent=1 // pred_fallthru
      _
    %225 = vsyncpa [#allocation3], 1
    %226 = vsyncpa [#allocation5], 1

</llo_original>
